<compile_context>
chip_gen: v7x
topology: tpu7x:2x2x1
jax: 0.10.0
libtpu: 0.0.40
codegen_flags: <defaults>
</compile_context>

<pallas_src>
import functools

import jax
import jax.numpy as jnp
from jax import lax
from jax.experimental import pallas as pl
from jax.experimental.pallas import tpu as pltpu


def _round_up(x, m):
    return (x + m - 1) // m * m


def _pick_tn(cout_pad):
    """Output-channel tile: 256 on 256-wide-MXU chips (v6e/v7x), else 128."""
    try:
        kind = jax.devices()[0].device_kind.lower()
    except Exception:
        kind = ""
    narrow = any(t in kind for t in ("v2", "v3", "v4", "v5"))
    if (not narrow) and cout_pad % 256 == 0:
        return 256
    return 128


def _pick_row_chunk(Ho, Wo, target=256):
    """Rows per accumulator chunk: bound the live f32 acc to ~target rows.

    Largest tr dividing Ho with tr*Wo <= target and tr*Wo % 8 == 0 (sublane-
    aligned stores).  Falls back to the whole image (a single chunk is always
    legal because the block dim then equals the full array dim).
    """
    if Ho * Wo <= target:
        return Ho
    for tr in range(Ho, 0, -1):
        if Ho % tr == 0 and tr * Wo <= target and (tr * Wo) % 8 == 0:
            return tr
    return Ho  # correctness fallback (unbounded acc, still right answer)


# -----------------------------------------------------------------------------
# Pallas kernel: 3x3 conv (3 kh-dots with kw folded into K, over a phase-
# decomposed padded NHWC block) + folded-BN bias + optional fused shortcut
# (identity or 1x1 conv + BN) + residual add + ReLU.
# One grid step = (image n, Cout tile j, row chunk c).
# -----------------------------------------------------------------------------
def _conv3x3_block_kernel(x_ref, w_ref, b_ref, *rest,
                          stride, Wo, tr, has_res, res_proj, relu):
    if has_res:
        if res_proj:
            r_ref, ws_ref, bs_ref, o_ref = rest
        else:
            r_ref, o_ref = rest
    else:
        (o_ref,) = rest

    cin = x_ref.shape[-1]
    r0 = pl.multiple_of(pl.program_id(2) * tr, tr)   # row-chunk offset

    acc = None
    for kh in range(3):
        # Fold the 3 kw taps into the contraction dim (small in-VMEM im2col):
        # one dot with K = 3*Cin instead of three dots with K = Cin.
        taps = []
        for kw in range(3):
            p = (kh % stride) * stride + (kw % stride)    # polyphase plane
            qh = kh // stride
            qw = kw // stride
            taps.append(x_ref[0, p, pl.ds(r0 + qh, tr), qw:qw + Wo, :])
        lhs = jnp.concatenate(taps, axis=-1).reshape(tr * Wo, 3 * cin)
        part = jnp.dot(lhs, w_ref[kh], preferred_element_type=jnp.float32)
        acc = part if acc is None else acc + part

    out = acc + b_ref[...].astype(jnp.float32)            # folded BN bias
    if has_res:
        r = r_ref[0]
        if res_proj:                                       # fused 1x1 conv + BN
            out = out + jnp.dot(r, ws_ref[...],
                                preferred_element_type=jnp.float32)
            out = out + bs_ref[...].astype(jnp.float32)
        else:                                              # identity shortcut
            out = out + r.astype(jnp.float32)
    if relu:
        out = jnp.maximum(out, 0.0)
    o_ref[0] = out.astype(o_ref.dtype)


def conv3x3_bn_fused(xph, w3, bias, *, stride, Ho, Wo,
                     residual=None, res_w=None, res_b=None, relu=True,
                     out_dtype=None):
    """Fused 3x3 conv + folded BN [+ shortcut/residual] + ReLU.

    xph   : [N, P, Hq, Wq, Cin]   phase-decomposed padded NHWC input (P = s*s)
    w3    : [3, 3*Cin, Cout_pad]  conv weight, BN scale folded, kw folded into K
    bias  : [1, Cout_pad]         folded BN bias (f32)
    residual: [N, Ho*Wo, Csc]     optional shortcut activation (flattened)
    res_w : [Csc, Cout_pad]       optional 1x1-shortcut weight (BN folded)
    res_b : [1, Cout_pad]         optional shortcut BN bias (f32)
    returns [N, Ho*Wo, Cout_pad]
    """
    N, P, Hq, Wq, Cin = xph.shape
    Cout_pad = w3.shape[-1]
    out_dtype = xph.dtype if out_dtype is None else out_dtype

    tn = _pick_tn(Cout_pad)
    J = Cout_pad // tn
    M = Ho * Wo
    tr = _pick_row_chunk(Ho, Wo)
    C = Ho // tr

    has_res = residual is not None
    res_proj = res_w is not None

    kernel = functools.partial(
        _conv3x3_block_kernel, stride=stride, Wo=Wo, tr=tr,
        has_res=has_res, res_proj=res_proj, relu=relu)

    # Grid (N, J, C): row chunks innermost so the weight tile stays resident
    # across chunks; the phase input is fetched once per image (index map
    # ignores j and c).
    in_specs = [
        pl.BlockSpec((1, P, Hq, Wq, Cin), lambda n, j, c: (n, 0, 0, 0, 0)),
        pl.BlockSpec((3, 3 * Cin, tn), lambda n, j, c: (0, 0, j)),
        pl.BlockSpec((1, tn), lambda n, j, c: (0, j)),
    ]
    args = [xph, w3, bias]
    flops = 2 * N * M * (9 * Cin) * Cout_pad
    if has_res:
        Csc = residual.shape[-1]
        if res_proj:
            in_specs += [
                pl.BlockSpec((1, tr * Wo, Csc), lambda n, j, c: (n, c, 0)),
                pl.BlockSpec((Csc, tn), lambda n, j, c: (0, j)),
                pl.BlockSpec((1, tn), lambda n, j, c: (0, j)),
            ]
            args += [residual, res_w, res_b]
            flops += 2 * N * M * Csc * Cout_pad
        else:
            in_specs.append(
                pl.BlockSpec((1, tr * Wo, tn), lambda n, j, c: (n, c, j)))
            args.append(residual)

    bytes_accessed = sum(int(a.size) * a.dtype.itemsize for a in args)
    bytes_accessed += N * M * Cout_pad * jnp.dtype(out_dtype).itemsize

    return pl.pallas_call(
        kernel,
        out_shape=jax.ShapeDtypeStruct((N, M, Cout_pad), out_dtype),
        grid=(N, J, C),
        in_specs=in_specs,
        out_specs=pl.BlockSpec((1, tr * Wo, tn), lambda n, j, c: (n, c, j)),
        compiler_params=pltpu.CompilerParams(
            dimension_semantics=("parallel", "parallel", "parallel"),
            vmem_limit_bytes=48 * 1024 * 1024),
        cost_estimate=pl.CostEstimate(
            flops=flops, transcendentals=0, bytes_accessed=bytes_accessed),
    )(*args)


# -----------------------------------------------------------------------------
# Wrapper glue (plain JAX): padding, polyphase split, BN folding, weight prep.
# -----------------------------------------------------------------------------
def _pad_and_phase(x_nhwc, stride):
    """Zero-pad by 1 and split into s*s polyphase components.

    Returns ([N, s*s, Hq, Wq, C], Ho, Wo).  Total memory ~1x the input.
    """
    N, H, W, C = x_nhwc.shape
    xp = jnp.pad(x_nhwc, ((0, 0), (1, 1), (1, 1), (0, 0)))
    Hp, Wp = H + 2, W + 2
    if stride > 1:
        ph, pw = (-Hp) % stride, (-Wp) % stride
        if ph or pw:
            xp = jnp.pad(xp, ((0, 0), (0, ph), (0, pw), (0, 0)))
        phases = [xp[:, rh::stride, rc::stride, :]
                  for rh in range(stride) for rc in range(stride)]
        xph = jnp.stack(phases, axis=1)
    else:
        xph = xp[:, None]
    Ho = (H - 1) // stride + 1
    Wo = (W - 1) // stride + 1
    return xph, Ho, Wo


def _fold_bn(gamma, beta, mean, var, eps=1e-5):
    scale = gamma / jnp.sqrt(var + eps)
    bias = beta - mean * scale
    return scale, bias


def _prep_conv3x3_w(w_oihw, scale, cout_pad, dtype):
    """OIHW 3x3 weight -> [3, 3*Cin, Cout_pad], BN scale folded, kw folded in K."""
    Cout, Cin = w_oihw.shape[0], w_oihw.shape[1]
    w = jnp.transpose(w_oihw, (2, 3, 1, 0))                 # (3, 3, Cin, Cout)
    w = w * scale[None, None, None, :]
    w = jnp.pad(w, ((0, 0), (0, 0), (0, 0), (0, cout_pad - Cout)))
    return w.reshape(3, 3 * Cin, cout_pad).astype(dtype)


def _prep_conv1x1_w(w_oihw, scale, cout_pad, dtype):
    Cout, Cin = w_oihw.shape[0], w_oihw.shape[1]
    w = jnp.transpose(w_oihw, (2, 3, 1, 0)).reshape(Cin, Cout) * scale[None, :]
    return jnp.pad(w, ((0, 0), (0, cout_pad - Cout))).astype(dtype)


def _prep_bias(bias, cout_pad):
    return jnp.pad(bias, (0, cout_pad - bias.shape[0])).reshape(1, cout_pad)


def residual_block_forward(x_nchw, params, stride, compute_dtype=jnp.float32):
    """Exact forward of the PyTorch ResidualBlock (eval-mode BN). NCHW in/out.

    compute_dtype: dtype of the MXU operands (activations / weights / residual).
    bf16 is the v6e/v7x fast path; accumulation and epilogue stay f32.
    """
    x = jnp.transpose(x_nchw, (0, 2, 3, 1))        # -> NHWC
    N, H, W, Cin = x.shape
    Cout = params["conv1_w"].shape[0]
    Cpad = _round_up(Cout, 128)                    # lane-dense output channels

    # --- conv1 (3x3, stride) + bn1 + relu ------------------------------------
    s1, b1 = _fold_bn(params["bn1_gamma"], params["bn1_beta"],
                      params["bn1_mean"], params["bn1_var"])
    xph1, Ho, Wo = _pad_and_phase(x, stride)
    w1 = _prep_conv3x3_w(params["conv1_w"], s1, Cpad, compute_dtype)
    out1 = conv3x3_bn_fused(xph1.astype(compute_dtype), w1, _prep_bias(b1, Cpad),
                            stride=stride, Ho=Ho, Wo=Wo, relu=True,
                            out_dtype=compute_dtype)
    out1_nhwc = out1[:, :, :Cout].reshape(N, Ho, Wo, Cout)
    # TODO(synk): store conv1 directly into a pre-zeroed padded (Ho+2, Wo+2)
    # buffer (input_output_aliases) to remove this slice + re-pad HBM pass.

    # --- shortcut (identity or 1x1 strided conv + bn, fused into conv2) ------
    if stride != 1 or Cin != Cout:
        ss, bs = _fold_bn(params["sc_gamma"], params["sc_beta"],
                          params["sc_mean"], params["sc_var"])
        xs = x[:, 0:stride * (Ho - 1) + 1:stride,
               0:stride * (Wo - 1) + 1:stride, :].reshape(N, Ho * Wo, Cin)
        res = xs.astype(compute_dtype)
        res_w = _prep_conv1x1_w(params["sc_w"], ss, Cpad, compute_dtype)
        res_b = _prep_bias(bs, Cpad)
    else:
        res = jnp.pad(x.reshape(N, H * W, Cin),
                      ((0, 0), (0, 0), (0, Cpad - Cin))).astype(compute_dtype)
        res_w = res_b = None

    # --- conv2 (3x3, stride 1) + bn2 + shortcut + residual add + relu --------
    s2, b2 = _fold_bn(params["bn2_gamma"], params["bn2_beta"],
                      params["bn2_mean"], params["bn2_var"])
    xph2, _, _ = _pad_and_phase(out1_nhwc, 1)
    w2 = _prep_conv3x3_w(params["conv2_w"], s2, Cpad, compute_dtype)
    out = conv3x3_bn_fused(xph2, w2, _prep_bias(b2, Cpad),
                           stride=1, Ho=Ho, Wo=Wo,
                           residual=res, res_w=res_w, res_b=res_b, relu=True,
                           out_dtype=jnp.float32)

    out_nhwc = out[:, :, :Cout].reshape(N, Ho, Wo, Cout)
    return jnp.transpose(out_nhwc, (0, 3, 1, 2))   # -> NCHW


# -----------------------------------------------------------------------------
# Pure-JAX reference (lax.conv, f32-exact) for correctness check
# -----------------------------------------------------------------------------
def reference_forward(x, params, stride, eps=1e-5):
    def conv(x, w, s, p):
        return lax.conv_general_dilated(
            x, w, (s, s), [(p, p), (p, p)],
            dimension_numbers=("NCHW", "OIHW", "NCHW"),
            precision=lax.Precision.HIGHEST)

    def bn(x, g, b, m, v):
        g = g[None, :, None, None]; b = b[None, :, None, None]
        m = m[None, :, None, None]; v = v[None, :, None, None]
        return (x - m) / jnp.sqrt(v + eps) * g + b

    out = jax.nn.relu(bn(conv(x, params["conv1_w"], stride, 1),
                         params["bn1_gamma"], params["bn1_beta"],
                         params["bn1_mean"], params["bn1_var"]))
    out = bn(conv(out, params["conv2_w"], 1, 1),
             params["bn2_gamma"], params["bn2_beta"],
             params["bn2_mean"], params["bn2_var"])
    Cin = x.shape[1]
    Cout = params["conv1_w"].shape[0]
    if stride != 1 or Cin != Cout:
        sc = bn(conv(x, params["sc_w"], stride, 0),
                params["sc_gamma"], params["sc_beta"],
                params["sc_mean"], params["sc_var"])
    else:
        sc = x
    return jax.nn.relu(out + sc)


# -----------------------------------------------------------------------------
if __name__ == "__main__":
    key = jax.random.PRNGKey(0)
    keys = jax.random.split(key, 16)

    N, Cin, H, W = 2, 4, 16, 16
    Cout, stride = 8, 2   # exercises the fused 1x1 conv + BN shortcut path

    x = jax.random.normal(keys[0], (N, Cin, H, W), jnp.float32)

    params = dict(
        conv1_w=0.1 * jax.random.normal(keys[1], (Cout, Cin, 3, 3), jnp.float32),
        bn1_gamma=1.0 + 0.1 * jax.random.normal(keys[2], (Cout,), jnp.float32),
        bn1_beta=0.1 * jax.random.normal(keys[3], (Cout,), jnp.float32),
        bn1_mean=jnp.zeros((Cout,), jnp.float32),
        bn1_var=jnp.ones((Cout,), jnp.float32),
        conv2_w=0.1 * jax.random.normal(keys[4], (Cout, Cout, 3, 3), jnp.float32),
        bn2_gamma=1.0 + 0.1 * jax.random.normal(keys[5], (Cout,), jnp.float32),
        bn2_beta=0.1 * jax.random.normal(keys[6], (Cout,), jnp.float32),
        bn2_mean=jnp.zeros((Cout,), jnp.float32),
        bn2_var=jnp.ones((Cout,), jnp.float32),
        sc_w=0.1 * jax.random.normal(keys[7], (Cout, Cin, 1, 1), jnp.float32),
        sc_gamma=1.0 + 0.1 * jax.random.normal(keys[8], (Cout,), jnp.float32),
        sc_beta=0.1 * jax.random.normal(keys[9], (Cout,), jnp.float32),
        sc_mean=jnp.zeros((Cout,), jnp.float32),
        sc_var=jnp.ones((Cout,), jnp.float32),
    )

    ref = jax.block_until_ready(reference_forward(x, params, stride))

    # f32 MXU operands: strict check against the f32 lax.conv reference.
    out_f32 = jax.block_until_ready(
        residual_block_forward(x, params, stride, compute_dtype=jnp.float32))
    assert out_f32.shape == ref.shape, (out_f32.shape, ref.shape)
    assert jnp.allclose(out_f32, ref, atol=1e-4, rtol=1e-4), \
        float(jnp.max(jnp.abs(out_f32 - ref)))

    # bf16 MXU operands (v6e/v7x fast path), f32 accumulate: loose tolerance.
    out_bf16 = jax.block_until_ready(
        residual_block_forward(x, params, stride, compute_dtype=jnp.bfloat16))
    assert jnp.allclose(out_bf16, ref, atol=5e-2, rtol=5e-2), \
        float(jnp.max(jnp.abs(out_bf16 - ref)))

    print("KERNEL_OK")
</pallas_src>

<mosaic_0001>
module attributes {stable_mosaic.version = 11 : i64} {
  func.func @_conv3x3_block_kernel(%arg0: i32, %arg1: i32, %arg2: i32, %arg3: memref<1x4x9x9x4xf32, #tpu.memory_space<vmem>>, %arg4: memref<3x12x128xf32, #tpu.memory_space<vmem>>, %arg5: memref<1x128xf32, #tpu.memory_space<vmem>>, %arg6: memref<1x64x128xf32, #tpu.memory_space<vmem>>) attributes {dimension_semantics = [#tpu.dimension_semantics<parallel>, #tpu.dimension_semantics<parallel>, #tpu.dimension_semantics<parallel>], iteration_bounds = array<i64: 2, 1, 1>, scalar_prefetch = 0 : i64, scratch_operands = 0 : i64, tpu.core_type = #tpu.core_type<tc>, window_params = [{transform_indices = @transform_0, window_bounds = array<i64: 1, 4, 9, 9, 4>}, {transform_indices = @transform_1, window_bounds = array<i64: 3, 12, 128>}, {transform_indices = @transform_2, window_bounds = array<i64: 1, 128>}, {transform_indices = @transform_3, window_bounds = array<i64: 1, 64, 128>}]} {
    %c8_i32 = arith.constant 8 : i32
    %0 = arith.muli %arg2, %c8_i32 : i32
    %1 = tpu.assume_multiple %0, 8 : i32
    %c0_i32 = arith.constant 0 : i32
    %2 = arith.addi %1, %c0_i32 : i32
    %c0 = arith.constant 0 : index
    %c0_0 = arith.constant 0 : index
    %3 = arith.index_cast %2 : i32 to index
    %c0_1 = arith.constant 0 : index
    %c0_2 = arith.constant 0 : index
    %4 = vector.load %arg3[%c0, %c0_0, %3, %c0_1, %c0_2] : memref<1x4x9x9x4xf32, #tpu.memory_space<vmem>>, vector<1x1x8x8x4xf32>
    %5 = vector.shape_cast %4 : vector<1x1x8x8x4xf32> to vector<8x8x4xf32>
    %c0_i32_3 = arith.constant 0 : i32
    %6 = arith.addi %1, %c0_i32_3 : i32
    %c0_4 = arith.constant 0 : index
    %c1 = arith.constant 1 : index
    %7 = arith.index_cast %6 : i32 to index
    %c0_5 = arith.constant 0 : index
    %c0_6 = arith.constant 0 : index
    %8 = vector.load %arg3[%c0_4, %c1, %7, %c0_5, %c0_6] : memref<1x4x9x9x4xf32, #tpu.memory_space<vmem>>, vector<1x1x8x8x4xf32>
    %9 = vector.shape_cast %8 : vector<1x1x8x8x4xf32> to vector<8x8x4xf32>
    %c0_i32_7 = arith.constant 0 : i32
    %10 = arith.addi %1, %c0_i32_7 : i32
    %c0_8 = arith.constant 0 : index
    %c0_9 = arith.constant 0 : index
    %11 = arith.index_cast %10 : i32 to index
    %c1_10 = arith.constant 1 : index
    %c0_11 = arith.constant 0 : index
    %12 = vector.load %arg3[%c0_8, %c0_9, %11, %c1_10, %c0_11] : memref<1x4x9x9x4xf32, #tpu.memory_space<vmem>>, vector<1x1x8x8x4xf32>
    %13 = vector.shape_cast %12 : vector<1x1x8x8x4xf32> to vector<8x8x4xf32>
    %14 = tpu.concatenate %5, %9, %13 in 2 : vector<8x8x4xf32>, vector<8x8x4xf32>, vector<8x8x4xf32> -> vector<8x8x12xf32>
    %15 = vector.shape_cast %14 : vector<8x8x12xf32> to vector<64x12xf32>
    %c0_12 = arith.constant 0 : index
    %c0_13 = arith.constant 0 : index
    %c0_14 = arith.constant 0 : index
    %16 = vector.load %arg4[%c0_12, %c0_13, %c0_14] : memref<3x12x128xf32, #tpu.memory_space<vmem>>, vector<1x12x128xf32>
    %17 = vector.shape_cast %16 : vector<1x12x128xf32> to vector<12x128xf32>
    %cst = arith.constant dense<0.000000e+00> : vector<64x128xf32>
    %18 = tpu.matmul %15, %17, %cst {dimension_numbers = #tpu.dot_dimension_numbers<[1], [0], [0], [1], [0, 0, 1, 1], [], []>} : vector<64x12xf32>, vector<12x128xf32>, vector<64x128xf32> -> vector<64x128xf32>
    %c0_i32_15 = arith.constant 0 : i32
    %19 = arith.addi %1, %c0_i32_15 : i32
    %c0_16 = arith.constant 0 : index
    %c2 = arith.constant 2 : index
    %20 = arith.index_cast %19 : i32 to index
    %c0_17 = arith.constant 0 : index
    %c0_18 = arith.constant 0 : index
    %21 = vector.load %arg3[%c0_16, %c2, %20, %c0_17, %c0_18] : memref<1x4x9x9x4xf32, #tpu.memory_space<vmem>>, vector<1x1x8x8x4xf32>
    %22 = vector.shape_cast %21 : vector<1x1x8x8x4xf32> to vector<8x8x4xf32>
    %c0_i32_19 = arith.constant 0 : i32
    %23 = arith.addi %1, %c0_i32_19 : i32
    %c0_20 = arith.constant 0 : index
    %c3 = arith.constant 3 : index
    %24 = arith.index_cast %23 : i32 to index
    %c0_21 = arith.constant 0 : index
    %c0_22 = arith.constant 0 : index
    %25 = vector.load %arg3[%c0_20, %c3, %24, %c0_21, %c0_22] : memref<1x4x9x9x4xf32, #tpu.memory_space<vmem>>, vector<1x1x8x8x4xf32>
    %26 = vector.shape_cast %25 : vector<1x1x8x8x4xf32> to vector<8x8x4xf32>
    %c0_i32_23 = arith.constant 0 : i32
    %27 = arith.addi %1, %c0_i32_23 : i32
    %c0_24 = arith.constant 0 : index
    %c2_25 = arith.constant 2 : index
    %28 = arith.index_cast %27 : i32 to index
    %c1_26 = arith.constant 1 : index
    %c0_27 = arith.constant 0 : index
    %29 = vector.load %arg3[%c0_24, %c2_25, %28, %c1_26, %c0_27] : memref<1x4x9x9x4xf32, #tpu.memory_space<vmem>>, vector<1x1x8x8x4xf32>
    %30 = vector.shape_cast %29 : vector<1x1x8x8x4xf32> to vector<8x8x4xf32>
    %31 = tpu.concatenate %22, %26, %30 in 2 : vector<8x8x4xf32>, vector<8x8x4xf32>, vector<8x8x4xf32> -> vector<8x8x12xf32>
    %32 = vector.shape_cast %31 : vector<8x8x12xf32> to vector<64x12xf32>
    %c1_28 = arith.constant 1 : index
    %c0_29 = arith.constant 0 : index
    %c0_30 = arith.constant 0 : index
    %33 = vector.load %arg4[%c1_28, %c0_29, %c0_30] : memref<3x12x128xf32, #tpu.memory_space<vmem>>, vector<1x12x128xf32>
    %34 = vector.shape_cast %33 : vector<1x12x128xf32> to vector<12x128xf32>
    %cst_31 = arith.constant dense<0.000000e+00> : vector<64x128xf32>
    %35 = tpu.matmul %32, %34, %cst_31 {dimension_numbers = #tpu.dot_dimension_numbers<[1], [0], [0], [1], [0, 0, 1, 1], [], []>} : vector<64x12xf32>, vector<12x128xf32>, vector<64x128xf32> -> vector<64x128xf32>
    %36 = arith.addf %18, %35 : vector<64x128xf32>
    %c1_i32 = arith.constant 1 : i32
    %37 = arith.addi %1, %c1_i32 : i32
    %c0_32 = arith.constant 0 : index
    %c0_33 = arith.constant 0 : index
    %38 = arith.index_cast %37 : i32 to index
    %c0_34 = arith.constant 0 : index
    %c0_35 = arith.constant 0 : index
    %39 = vector.load %arg3[%c0_32, %c0_33, %38, %c0_34, %c0_35] : memref<1x4x9x9x4xf32, #tpu.memory_space<vmem>>, vector<1x1x8x8x4xf32>
    %40 = vector.shape_cast %39 : vector<1x1x8x8x4xf32> to vector<8x8x4xf32>
    %c1_i32_36 = arith.constant 1 : i32
    %41 = arith.addi %1, %c1_i32_36 : i32
    %c0_37 = arith.constant 0 : index
    %c1_38 = arith.constant 1 : index
    %42 = arith.index_cast %41 : i32 to index
    %c0_39 = arith.constant 0 : index
    %c0_40 = arith.constant 0 : index
    %43 = vector.load %arg3[%c0_37, %c1_38, %42, %c0_39, %c0_40] : memref<1x4x9x9x4xf32, #tpu.memory_space<vmem>>, vector<1x1x8x8x4xf32>
    %44 = vector.shape_cast %43 : vector<1x1x8x8x4xf32> to vector<8x8x4xf32>
    %c1_i32_41 = arith.constant 1 : i32
    %45 = arith.addi %1, %c1_i32_41 : i32
    %c0_42 = arith.constant 0 : index
    %c0_43 = arith.constant 0 : index
    %46 = arith.index_cast %45 : i32 to index
    %c1_44 = arith.constant 1 : index
    %c0_45 = arith.constant 0 : index
    %47 = vector.load %arg3[%c0_42, %c0_43, %46, %c1_44, %c0_45] : memref<1x4x9x9x4xf32, #tpu.memory_space<vmem>>, vector<1x1x8x8x4xf32>
    %48 = vector.shape_cast %47 : vector<1x1x8x8x4xf32> to vector<8x8x4xf32>
    %49 = tpu.concatenate %40, %44, %48 in 2 : vector<8x8x4xf32>, vector<8x8x4xf32>, vector<8x8x4xf32> -> vector<8x8x12xf32>
    %50 = vector.shape_cast %49 : vector<8x8x12xf32> to vector<64x12xf32>
    %c2_46 = arith.constant 2 : index
    %c0_47 = arith.constant 0 : index
    %c0_48 = arith.constant 0 : index
    %51 = vector.load %arg4[%c2_46, %c0_47, %c0_48] : memref<3x12x128xf32, #tpu.memory_space<vmem>>, vector<1x12x128xf32>
    %52 = vector.shape_cast %51 : vector<1x12x128xf32> to vector<12x128xf32>
    %cst_49 = arith.constant dense<0.000000e+00> : vector<64x128xf32>
    %53 = tpu.matmul %50, %52, %cst_49 {dimension_numbers = #tpu.dot_dimension_numbers<[1], [0], [0], [1], [0, 0, 1, 1], [], []>} : vector<64x12xf32>, vector<12x128xf32>, vector<64x128xf32> -> vector<64x128xf32>
    %54 = arith.addf %36, %53 : vector<64x128xf32>
    %c0_50 = arith.constant 0 : index
    %c0_51 = arith.constant 0 : index
    %55 = vector.load %arg5[%c0_50, %c0_51] : memref<1x128xf32, #tpu.memory_space<vmem>>, vector<1x128xf32>
    %56 = vector.broadcast %55 : vector<1x128xf32> to vector<64x128xf32>
    %57 = arith.addf %54, %56 : vector<64x128xf32>
    %cst_52 = arith.constant 0.000000e+00 : f32
    %58 = vector.broadcast %cst_52 : f32 to vector<64x128xf32>
    %59 = arith.maximumf %57, %58 : vector<64x128xf32>
    %c0_53 = arith.constant 0 : index
    %c0_54 = arith.constant 0 : index
    %c0_55 = arith.constant 0 : index
    %60 = vector.load %arg6[%c0_53, %c0_54, %c0_55] : memref<1x64x128xf32, #tpu.memory_space<vmem>>, vector<1x64x128xf32>
    %61 = vector.shape_cast %60 : vector<1x64x128xf32> to vector<64x128xf32>
    %62 = vector.shape_cast %59 : vector<64x128xf32> to vector<1x64x128xf32>
    tpu.vector_store %arg6[%c0_53, %c0_54, %c0_55], %62 {strides = array<i32>} : memref<1x64x128xf32, #tpu.memory_space<vmem>>, vector<1x64x128xf32>,
    return
  }
  func.func @transform_0(%arg0: i32, %arg1: i32, %arg2: i32) -> (i32, i32, i32, i32, i32) {
    %c0_i32 = arith.constant 0 : i32
    %c0_i32_0 = arith.constant 0 : i32
    %c0_i32_1 = arith.constant 0 : i32
    %c0_i32_2 = arith.constant 0 : i32
    %c0_i32_3 = arith.constant 0 : i32
    return %arg0, %c0_i32, %c0_i32_0, %c0_i32_1, %c0_i32_2 : i32, i32, i32, i32, i32
  }
  func.func @transform_1(%arg0: i32, %arg1: i32, %arg2: i32) -> (i32, i32, i32) {
    %c0_i32 = arith.constant 0 : i32
    %c0_i32_0 = arith.constant 0 : i32
    %c0_i32_1 = arith.constant 0 : i32
    return %c0_i32, %c0_i32_0, %arg1 : i32, i32, i32
  }
  func.func @transform_2(%arg0: i32, %arg1: i32, %arg2: i32) -> (i32, i32) {
    %c0_i32 = arith.constant 0 : i32
    %c0_i32_0 = arith.constant 0 : i32
    return %c0_i32, %arg1 : i32, i32
  }
  func.func @transform_3(%arg0: i32, %arg1: i32, %arg2: i32) -> (i32, i32, i32) {
    %c0_i32 = arith.constant 0 : i32
    return %arg0, %arg2, %arg1 : i32, i32, i32
  }
}

</mosaic_0001>

<llo_original>
// kernel: tpu_custom_call.1
$region0: #{tpu_custom_call.1}
  #allocation0 [shape = 'u32[]', space=smem, size = 0x4, offset = 0x4, fixed_abs, tag = 'smem constant byte address 0x4 - core index']
  #allocation1 [shape = 'u32[144,128]{1,0:T(1,128)}', space=vmem, size = 0x12000, scoped, tag = 'internal scratch']
  %s0 = inlined_call_operand.vmem [shape: f32[2,4,9,9,4], index: 0, kind: input, shape index: {}]
  %s1 = inlined_call_operand.vmem [shape: f32[3,12,128], index: 1, kind: input, shape index: {}]
  %s2 = inlined_call_operand.vmem [shape: f32[1,128], index: 2, kind: input, shape index: {}]
  %s3 = inlined_call_operand.hbm [shape: f32[2,64,128], index: 3, kind: output, shape index: {}]
  %s4 = sld [smem:[#allocation0]]
  $region45: #{tpu_custom_call.1} parent=0
    _
  %s6 = ssub.s32 1, %s4
  %s7 = scalar_select 0, %s6, %s4
  $region1: #{tpu_custom_call.1} parent=0
    #allocation2 [shape = 'u8[65536]{0}', space=vmem, size = 0x10000, scoped, tag = 'output window, operand 0']
    #allocation3 [shape = 's32[2]{0}', space=sflag, size = 0x8, scoped, tag = 'scoped memory for tpu_custom_call.1']
    %8 = vsyncpa [#allocation3], 0
    %s9 = scalar_lea.sflag [#allocation3], 1
    %10 = vsyncpa %s9, 0
    loop: start=0, step=1, limit=4
    $region2: #{tpu_custom_call.1} parent=1 // loop_pre_header
      _
    $region3: #{tpu_custom_call.1} parent=1 // loop_header
      %s12 = sphi 0, %s16
      %p13 = scmp.ge.s32.totalorder %s12, 4
      %s19 = sphi 0, %s38
      %s20 = sphi 0, %s34
      %s21 = sphi 0, %s30
      %s22 = sphi 0, %s19
      %s23 = sphi 0, %s20
      %s24 = sphi 0, %s21
      %s25 = sphi 0, %s22
      %s26 = sphi 0, %s23
      %s27 = sphi 0, %s24
      %s41 = sphi 0, %s43
      %s44 = sphi 0, %s41
      %s45 = sphi 0, %s44
      %s61 = sphi 0, %s45
      %s67 = sphi 0, %s69
      %s70 = sphi 0, %s67
      %s71 = sphi 0, %s70
      %s87 = sphi 0, %s71
      %s93 = sphi 0, %s95
      %s96 = sphi 0, %s93
      %s97 = sphi 0, %s96
      %s113 = sphi 0, %s97
      %s123 = sphi 0, %s125
      %s126 = sphi 0, %s123
      %s127 = sphi 0, %s126
      %s143 = sphi 0, %s127
    $region4: #{tpu_custom_call.1} parent=1 // loop_header_branch
      %15 = sbr.rel (%p13) target = $region8
    $region5: #{tpu_custom_call.1} parent=1 // loop_body
      %s17 = ssub.s32 %s12, 1
      %s18 = ssub.s32 %s12, 2
      %s28 = sadd.s32 1, %s21
      %p29 = scmp.ge.s32.totalorder %s28, 1
      %s30 = scalar_select %p29, 0, %s28
      %s31 = sadd.s32 1, %s20
      %s32 = scalar_select %p29, %s31, %s20
      %p33 = scmp.ge.s32.totalorder %s32, 1
      %s34 = scalar_select %p33, 0, %s32
      %s35 = sadd.s32 1, %s19
      %s36 = scalar_select %p33, %s35, %s19
      %p37 = scmp.ge.s32.totalorder %s36, 2
      %s38 = scalar_select %p37, 0, %s36
      %s39 = ssub.s32 %s19, %s38
      %p40 = scmp.eq.s32.totalorder %s39, 0
      %s42 = sadd.s32 %s41, 1
      %s43 = scalar_select %p40, %s41, %s42
      %p46 = pneg %p40
      %p47 = scmp.eq.s32.totalorder %s12, 1
      %p48 = por %p46, %p47
      %p49 = scmp.ne.s32.totalorder %s41, %s44
      %p50 = scmp.eq.s32.totalorder %s12, 0
      %p51 = por %p49, %p50
      %p52 = scmp.ne.s32.totalorder %s41, %s44
      %p53 = scmp.eq.s32.totalorder %s17, 1
      %p54 = por %p52, %p53
      %p55 = scmp.ne.s32.totalorder %s44, %s45
      %p56 = scmp.eq.s32.totalorder %s17, 0
      %p57 = por %p55, %p56
      %p58 = scmp.ne.s32.totalorder %s44, %s45
      %p59 = scmp.eq.s32.totalorder %s18, 1
      %p60 = por %p58, %p59
      %p62 = scmp.ne.s32.totalorder %s45, %s61
      %p63 = scmp.eq.s32.totalorder %s18, 0
      %p64 = por %p62, %p63
      %s65 = ssub.s32 %s20, %s34
      %p66 = scmp.eq.s32.totalorder %s65, 0
      %s68 = sadd.s32 %s67, 1
      %s69 = scalar_select %p66, %s67, %s68
      %p72 = pneg %p66
      %p73 = scmp.eq.s32.totalorder %s12, 1
      %p74 = por %p72, %p73
      %p75 = scmp.ne.s32.totalorder %s67, %s70
      %p76 = scmp.eq.s32.totalorder %s12, 0
      %p77 = por %p75, %p76
      %p78 = scmp.ne.s32.totalorder %s67, %s70
      %p79 = scmp.eq.s32.totalorder %s17, 1
      %p80 = por %p78, %p79
      %p81 = scmp.ne.s32.totalorder %s70, %s71
      %p82 = scmp.eq.s32.totalorder %s17, 0
      %p83 = por %p81, %p82
      %p84 = scmp.ne.s32.totalorder %s70, %s71
      %p85 = scmp.eq.s32.totalorder %s18, 1
      %p86 = por %p84, %p85
      %p88 = scmp.ne.s32.totalorder %s71, %s87
      %p89 = scmp.eq.s32.totalorder %s18, 0
      %p90 = por %p88, %p89
      %s91 = ssub.s32 %s20, %s34
      %p92 = scmp.eq.s32.totalorder %s91, 0
      %s94 = sadd.s32 %s93, 1
      %s95 = scalar_select %p92, %s93, %s94
      %p98 = pneg %p92
      %p99 = scmp.eq.s32.totalorder %s12, 1
      %p100 = por %p98, %p99
      %p101 = scmp.ne.s32.totalorder %s93, %s96
      %p102 = scmp.eq.s32.totalorder %s12, 0
      %p103 = por %p101, %p102
      %p104 = scmp.ne.s32.totalorder %s93, %s96
      %p105 = scmp.eq.s32.totalorder %s17, 1
      %p106 = por %p104, %p105
      %p107 = scmp.ne.s32.totalorder %s96, %s97
      %p108 = scmp.eq.s32.totalorder %s17, 0
      %p109 = por %p107, %p108
      %p110 = scmp.ne.s32.totalorder %s96, %s97
      %p111 = scmp.eq.s32.totalorder %s18, 1
      %p112 = por %p110, %p111
      %p114 = scmp.ne.s32.totalorder %s97, %s113
      %p115 = scmp.eq.s32.totalorder %s18, 0
      %p116 = por %p114, %p115
      %s117 = ssub.s32 %s19, %s38
      %s118 = ssub.s32 %s21, %s30
      %s119 = sor.u32 %s117, %s118
      %s120 = ssub.s32 %s20, %s34
      %s121 = sor.u32 %s119, %s120
      %p122 = scmp.eq.s32.totalorder %s121, 0
      %s124 = sadd.s32 %s123, 1
      %s125 = scalar_select %p122, %s123, %s124
      %p128 = pneg %p122
      %p129 = scmp.eq.s32.totalorder %s12, 1
      %p130 = por %p128, %p129
      %p131 = scmp.ne.s32.totalorder %s123, %s126
      %p132 = scmp.eq.s32.totalorder %s12, 0
      %p133 = por %p131, %p132
      %p134 = scmp.ne.s32.totalorder %s123, %s126
      %p135 = scmp.eq.s32.totalorder %s17, 1
      %p136 = por %p134, %p135
      %p137 = scmp.ne.s32.totalorder %s126, %s127
      %p138 = scmp.eq.s32.totalorder %s17, 0
      %p139 = por %p137, %p138
      %p140 = scmp.ne.s32.totalorder %s126, %s127
      %p141 = scmp.eq.s32.totalorder %s18, 1
      %p142 = por %p140, %p141
      %p144 = scmp.ne.s32.totalorder %s127, %s143
      %p145 = scmp.eq.s32.totalorder %s18, 0
      %p146 = por %p144, %p145
      %p147 = scmp.le.s32.totalorder 1, %s12
      %p148 = scmp.lt.s32.totalorder %s12, 3
      %p149 = pnand %p147, %p148
      %p150 = pneg %p149
      // Predicated region
      $region9: #{tpu_custom_call.1} parent=5 // pred_check
        _
      $region10: #{tpu_custom_call.1} parent=5 // pred_check_branch
        %152 = sbr.rel (%p149) target = $region12
      $region11: #{tpu_custom_call.1} parent=5 // pred_region
        %s153 = ssub.s32 %s12, 1
        // Predicated region
        $region13: #{tpu_custom_call.1} parent=11 // pred_check
          %p154 = pneg %p83
        $region14: #{tpu_custom_call.1} parent=11 // pred_check_branch
          %156 = sbr.rel (%p154) target = $region16
        $region15: #{tpu_custom_call.1} parent=11 // pred_region
          %p157 = scmp.lt.s32.totalorder %s23, 0
          %s158 = scalar_select %p157, %s23, 0
          %s159 = smul.addr %s158, 8
          %s160 = scalar_lea.vmem %s1, %s159
        $region16: #{tpu_custom_call.1} parent=11 // pred_fallthru
          _
        // Predicated region
        $region17: #{tpu_custom_call.1} parent=11 // pred_check
          %p161 = pneg %p109
        $region18: #{tpu_custom_call.1} parent=11 // pred_check_branch
          %163 = sbr.rel (%p161) target = $region20
        $region19: #{tpu_custom_call.1} parent=11 // pred_region
          %p164 = scmp.lt.s32.totalorder %s23, 0
          %s165 = scalar_select %p164, %s23, 0
          %s166 = scalar_lea.vmem %s2, %s165
        $region20: #{tpu_custom_call.1} parent=11 // pred_fallthru
          _
      $region12: #{tpu_custom_call.1} parent=5 // pred_fallthru
        _
      %p167 = scmp.lt.s32.totalorder %s12, 2
      // Predicated region
      $region21: #{tpu_custom_call.1} parent=5 // pred_check
        %p168 = pneg %p167
      $region22: #{tpu_custom_call.1} parent=5 // pred_check_branch
        %170 = sbr.rel (%p168) target = $region24
      $region23: #{tpu_custom_call.1} parent=5 // pred_region
        // Predicated region
        $region25: #{tpu_custom_call.1} parent=23 // pred_check
          %p171 = pneg %p51
        $region26: #{tpu_custom_call.1} parent=23 // pred_check_branch
          %173 = sbr.rel (%p171) target = $region28
        $region27: #{tpu_custom_call.1} parent=23 // pred_region
          %p174 = scmp.lt.s32.totalorder %s19, 1
          %s175 = scalar_select %p174, %s19, 1
          %s176 = smul.addr %s175, 72
          %s177 = smul.addr %s176, 8
          %s178 = scalar_lea.vmem %s0, %s177
        $region28: #{tpu_custom_call.1} parent=23 // pred_fallthru
          _
      $region24: #{tpu_custom_call.1} parent=5 // pred_fallthru
        _
      %p179 = scmp.le.s32.totalorder 1, %s12
      %p180 = scmp.lt.s32.totalorder %s12, 3
      %p181 = pnand %p179, %p180
      %p182 = pneg %p181
      // Predicated region
      $region29: #{tpu_custom_call.1} parent=5 // pred_check
        _
      $region30: #{tpu_custom_call.1} parent=5 // pred_check_branch
        %184 = sbr.rel (%p181) target = $region32
      $region31: #{tpu_custom_call.1} parent=5 // pred_region
        %s185 = ssub.s32 %s12, 1
        %p186 = scmp.lt.s32.totalorder %s22, 1
        %s187 = scalar_select %p186, %s22, 1
        %s188 = smul.addr %s187, 72
        %s189 = smul.addr %s188, 8
        %s190 = scalar_lea.vmem %s0, %s189
        %p191 = pneg %p57
        %p192 = pneg %p54
        %p193 = scmp.lt.s32.totalorder %s23, 0
        %s194 = scalar_select %p193, %s23, 0
        %s195 = smul.addr %s194, 8
        %s196 = scalar_lea.vmem %s1, %s195
        %p197 = pneg %p83
        %p198 = pneg %p80
        %p199 = scmp.lt.s32.totalorder %s23, 0
        %s200 = scalar_select %p199, %s23, 0
        %s201 = scalar_lea.vmem %s2, %s200
        %p202 = pneg %p109
        %p203 = pneg %p106
        %p204 = pneg %p139
        %p205 = pneg %p136
        %s206 = sand.u32 %s126, 1
        %s207 = scalar_lea.sflag [#allocation3], %s206
        %s208 = sand.u32 %s126, 1
        %s209 = smul.addr %s208, 64
        %s210 = scalar_lea.vmem [#allocation2], %s209
        %p211 = scmp.lt.s32.totalorder %s22, 1
        %s212 = scalar_select %p211, %s22, 1
        %s213 = smul.addr %s212, 72
        %s214 = smul.addr %s213, 8
        %s215 = scalar_lea.vmem %s0, %s214
        %p216 = scmp.lt.s32.totalorder %s23, 0
        %s217 = scalar_select %p216, %s23, 0
        %s218 = smul.addr %s217, 8
        %s219 = scalar_lea.vmem %s1, %s218
        %p220 = scmp.lt.s32.totalorder %s23, 0
        %s221 = scalar_select %p220, %s23, 0
        %s222 = scalar_lea.vmem %s2, %s221
        %s223 = smul.u32 8, %s24
        %s224 = smul.u32 %s24, 8
        %s225 = smul.u32 %s224, 16
        %s226 = scalar_lea.vmem %s215, %s225
        %v227 = vld [vmem:[%s226] sm:$0xff]
        %v228 = vld [vmem:[%s226 + $0x10] sm:$0xff]
        %v229 = vld [vmem:[%s226 + $0x20] sm:$0xff]
        %v230 = vld [vmem:[%s226 + $0x30] sm:$0xff]
        %v231 = vld [vmem:[%s226 + $0x40] sm:$0xff]
        %v232 = vld [vmem:[%s226 + $0x50] sm:$0xff]
        %v233 = vld [vmem:[%s226 + $0x60] sm:$0xff]
        %v234 = vld [vmem:[%s226 + $0x70] sm:$0xff]
        %s235 = sadd.s32 %s225, 144
        %s236 = scalar_lea.vmem %s215, %s235
        %v237 = vld [vmem:[%s236] sm:$0xff]
        %v238 = vld [vmem:[%s236 + $0x10] sm:$0xff]
        %v239 = vld [vmem:[%s236 + $0x20] sm:$0xff]
        %v240 = vld [vmem:[%s236 + $0x30] sm:$0xff]
        %v241 = vld [vmem:[%s236 + $0x40] sm:$0xff]
        %v242 = vld [vmem:[%s236 + $0x50] sm:$0xff]
        %v243 = vld [vmem:[%s236 + $0x60] sm:$0xff]
        %v244 = vld [vmem:[%s236 + $0x70] sm:$0xff]
        %v245 = vld [vmem:[%s226 + $0x1] sm:$0xff]
        %v246 = vld [vmem:[%s226 + $0x11] sm:$0xff]
        %v247 = vld [vmem:[%s226 + $0x21] sm:$0xff]
        %v248 = vld [vmem:[%s226 + $0x31] sm:$0xff]
        %v249 = vld [vmem:[%s226 + $0x41] sm:$0xff]
        %v250 = vld [vmem:[%s226 + $0x51] sm:$0xff]
        %v251 = vld [vmem:[%s226 + $0x61] sm:$0xff]
        %v252 = vld [vmem:[%s226 + $0x71] sm:$0xff]
        %261 = vrot.lane.b32.xlu0 %v237, 4
        %v262 = vpop.permute.xlu0 %261
        %263 = vrot.lane.b32.xlu0 %v238, 4
        %v264 = vpop.permute.xlu0 %263
        %265 = vrot.lane.b32.xlu0 %v239, 4
        %v266 = vpop.permute.xlu0 %265
        %267 = vrot.lane.b32.xlu0 %v240, 4
        %v268 = vpop.permute.xlu0 %267
        %269 = vrot.lane.b32.xlu0 %v241, 4
        %v270 = vpop.permute.xlu0 %269
        %271 = vrot.lane.b32.xlu0 %v242, 4
        %v272 = vpop.permute.xlu0 %271
        %273 = vrot.lane.b32.xlu0 %v243, 4
        %v274 = vpop.permute.xlu0 %273
        %275 = vrot.lane.b32.xlu0 %v244, 4
        %v276 = vpop.permute.xlu0 %275
        %293 = vrot.lane.b32.xlu0 %v245, 8
        %v294 = vpop.permute.xlu0 %293
        %295 = vrot.lane.b32.xlu0 %v246, 8
        %v296 = vpop.permute.xlu0 %295
        %297 = vrot.lane.b32.xlu0 %v247, 8
        %v298 = vpop.permute.xlu0 %297
        %299 = vrot.lane.b32.xlu0 %v248, 8
        %v300 = vpop.permute.xlu0 %299
        %301 = vrot.lane.b32.xlu0 %v249, 8
        %v302 = vpop.permute.xlu0 %301
        %303 = vrot.lane.b32.xlu0 %v250, 8
        %v304 = vpop.permute.xlu0 %303
        %305 = vrot.lane.b32.xlu0 %v251, 8
        %v306 = vpop.permute.xlu0 %305
        %307 = vrot.lane.b32.xlu0 %v252, 8
        %v308 = vpop.permute.xlu0 %307
        %vm317 = vcmask 31744
        %v318 = vsel %vm317, %v227, %v262
        %v319 = vsel %vm317, %v228, %v264
        %v320 = vsel %vm317, %v229, %v266
        %v321 = vsel %vm317, %v230, %v268
        %v322 = vsel %vm317, %v231, %v270
        %v323 = vsel %vm317, %v232, %v272
        %v324 = vsel %vm317, %v233, %v274
        %v325 = vsel %vm317, %v234, %v276
        %vm326 = vcmask 64512
        %v327 = vsel %vm326, %v318, %v294
        %v328 = vsel %vm326, %v319, %v296
        %v329 = vsel %vm326, %v320, %v298
        %v330 = vsel %vm326, %v321, %v300
        %v331 = vsel %vm326, %v322, %v302
        %v332 = vsel %vm326, %v323, %v304
        %v333 = vsel %vm326, %v324, %v306
        %v334 = vsel %vm326, %v325, %v308
        %v335 = vld [vmem:[%s219] sm:$0xff]
        %v336 = vld [vmem:[%s219 + $0x8] sm:$0xf]
        %s337 = sadd.s32 %s225, 288
        %s338 = scalar_lea.vmem %s215, %s337
        %v339 = vld [vmem:[%s338] sm:$0xff]
        %v340 = vld [vmem:[%s338 + $0x10] sm:$0xff]
        %v341 = vld [vmem:[%s338 + $0x20] sm:$0xff]
        %v342 = vld [vmem:[%s338 + $0x30] sm:$0xff]
        %v343 = vld [vmem:[%s338 + $0x40] sm:$0xff]
        %v344 = vld [vmem:[%s338 + $0x50] sm:$0xff]
        %v345 = vld [vmem:[%s338 + $0x60] sm:$0xff]
        %v346 = vld [vmem:[%s338 + $0x70] sm:$0xff]
        %s347 = sadd.s32 %s225, 432
        %s348 = scalar_lea.vmem %s215, %s347
        %v349 = vld [vmem:[%s348] sm:$0xff]
        %v350 = vld [vmem:[%s348 + $0x10] sm:$0xff]
        %v351 = vld [vmem:[%s348 + $0x20] sm:$0xff]
        %v352 = vld [vmem:[%s348 + $0x30] sm:$0xff]
        %v353 = vld [vmem:[%s348 + $0x40] sm:$0xff]
        %v354 = vld [vmem:[%s348 + $0x50] sm:$0xff]
        %v355 = vld [vmem:[%s348 + $0x60] sm:$0xff]
        %v356 = vld [vmem:[%s348 + $0x70] sm:$0xff]
        %v357 = vld [vmem:[%s338 + $0x1] sm:$0xff]
        %v358 = vld [vmem:[%s338 + $0x11] sm:$0xff]
        %v359 = vld [vmem:[%s338 + $0x21] sm:$0xff]
        %v360 = vld [vmem:[%s338 + $0x31] sm:$0xff]
        %v361 = vld [vmem:[%s338 + $0x41] sm:$0xff]
        %v362 = vld [vmem:[%s338 + $0x51] sm:$0xff]
        %v363 = vld [vmem:[%s338 + $0x61] sm:$0xff]
        %v364 = vld [vmem:[%s338 + $0x71] sm:$0xff]
        %373 = vrot.lane.b32.xlu0 %v349, 4
        %v374 = vpop.permute.xlu0 %373
        %375 = vrot.lane.b32.xlu0 %v350, 4
        %v376 = vpop.permute.xlu0 %375
        %377 = vrot.lane.b32.xlu0 %v351, 4
        %v378 = vpop.permute.xlu0 %377
        %379 = vrot.lane.b32.xlu0 %v352, 4
        %v380 = vpop.permute.xlu0 %379
        %381 = vrot.lane.b32.xlu0 %v353, 4
        %v382 = vpop.permute.xlu0 %381
        %383 = vrot.lane.b32.xlu0 %v354, 4
        %v384 = vpop.permute.xlu0 %383
        %385 = vrot.lane.b32.xlu0 %v355, 4
        %v386 = vpop.permute.xlu0 %385
        %387 = vrot.lane.b32.xlu0 %v356, 4
        %v388 = vpop.permute.xlu0 %387
        %405 = vrot.lane.b32.xlu0 %v357, 8
        %v406 = vpop.permute.xlu0 %405
        %407 = vrot.lane.b32.xlu0 %v358, 8
        %v408 = vpop.permute.xlu0 %407
        %409 = vrot.lane.b32.xlu0 %v359, 8
        %v410 = vpop.permute.xlu0 %409
        %411 = vrot.lane.b32.xlu0 %v360, 8
        %v412 = vpop.permute.xlu0 %411
        %413 = vrot.lane.b32.xlu0 %v361, 8
        %v414 = vpop.permute.xlu0 %413
        %415 = vrot.lane.b32.xlu0 %v362, 8
        %v416 = vpop.permute.xlu0 %415
        %417 = vrot.lane.b32.xlu0 %v363, 8
        %v418 = vpop.permute.xlu0 %417
        %419 = vrot.lane.b32.xlu0 %v364, 8
        %v420 = vpop.permute.xlu0 %419
        %v429 = vsel %vm317, %v339, %v374
        %v430 = vsel %vm317, %v340, %v376
        %v431 = vsel %vm317, %v341, %v378
        %v432 = vsel %vm317, %v342, %v380
        %v433 = vsel %vm317, %v343, %v382
        %v434 = vsel %vm317, %v344, %v384
        %v435 = vsel %vm317, %v345, %v386
        %v436 = vsel %vm317, %v346, %v388
        %v437 = vsel %vm326, %v429, %v406
        %v438 = vsel %vm326, %v430, %v408
        %v439 = vsel %vm326, %v431, %v410
        %v440 = vsel %vm326, %v432, %v412
        %v441 = vsel %vm326, %v433, %v414
        %v442 = vsel %vm326, %v434, %v416
        %v443 = vsel %vm326, %v435, %v418
        %v444 = vsel %vm326, %v436, %v420
        %s445 = scalar_lea.vmem %s219, 16
        %v446 = vld [vmem:[%s445] sm:$0xff]
        %v447 = vld [vmem:[%s445 + $0x8] sm:$0xf]
        %vm448 = vcmask 97280
        %v450 = vsel %vm448, %v437, 0
        %v453 = vsel %vm448, %v438, 0
        %v456 = vsel %vm448, %v439, 0
        %v459 = vsel %vm448, %v440, 0
        %v462 = vsel %vm448, %v441, 0
        %v465 = vsel %vm448, %v442, 0
        %v468 = vsel %vm448, %v443, 0
        %v471 = vsel %vm448, %v444, 0
        %vm473 = vcmask 1043456
        %v475 = vsel %vm473, %v447, 0
        %477 = vmatprep.subr.mxu0 0.0
        %478 = vmatpush1.msra.mxu0 %v446
        %479 = vmatprep.subr.mxu0 0.0
        %480 = vmatpush1.msra.mxu0 %v475
        %481 = vmatprep.subr.mxu0 0.0
        %482 = vmatpush1.msra.mxu0 0.0
        %483 = vmatprep.subr.mxu0 0.0
        %484 = vmatpush1.msra.mxu0 0.0
        %485 = vmatprep.subr.mxu0 0.0
        %486 = vmatpush1.msra.mxu0 0.0
        %487 = vmatprep.subr.mxu0 0.0
        %488 = vmatpush1.msra.mxu0 0.0
        %489 = vmatprep.subr.mxu0 0.0
        %490 = vmatpush1.msra.mxu0 0.0
        %491 = vmatprep.subr.mxu0 0.0
        %492 = vmatpush1.msra.mxu0 0.0
        %493 = vmatprep.subr.mxu0 0.0
        %494 = vmatpush1.msra.mxu0 0.0
        %495 = vmatprep.subr.mxu0 0.0
        %496 = vmatpush1.msra.mxu0 0.0
        %497 = vmatprep.subr.mxu0 0.0
        %498 = vmatpush1.msra.mxu0 0.0
        %499 = vmatprep.subr.mxu0 0.0
        %500 = vmatpush1.msra.mxu0 0.0
        %501 = vmatprep.subr.mxu0 0.0
        %502 = vmatpush1.msra.mxu0 0.0
        %503 = vmatprep.subr.mxu0 0.0
        %504 = vmatpush1.msra.mxu0 0.0
        %505 = vmatprep.subr.mxu0 0.0
        %506 = vmatpush1.msra.mxu0 0.0
        %507 = vmatprep.subr.mxu0 0.0
        %508 = vmatpush1.msra.mxu0 0.0
        %509 = vmatprep.subr.mxu0 0.0
        %510 = vmatpush1.msra.mxu0 0.0
        %511 = vmatprep.subr.mxu0 0.0
        %512 = vmatpush1.msra.mxu0 0.0
        %513 = vmatprep.subr.mxu0 0.0
        %514 = vmatpush1.msra.mxu0 0.0
        %515 = vmatprep.subr.mxu0 0.0
        %516 = vmatpush1.msra.mxu0 0.0
        %517 = vmatprep.subr.mxu0 0.0
        %518 = vmatpush1.msra.mxu0 0.0
        %519 = vmatprep.subr.mxu0 0.0
        %520 = vmatpush1.msra.mxu0 0.0
        %521 = vmatprep.subr.mxu0 0.0
        %522 = vmatpush1.msra.mxu0 0.0
        %523 = vmatprep.subr.mxu0 0.0
        %524 = vmatpush1.msra.mxu0 0.0
        %525 = vmatprep.subr.mxu0 0.0
        %526 = vmatpush1.msra.mxu0 0.0
        %527 = vmatprep.subr.mxu0 0.0
        %528 = vmatpush1.msra.mxu0 0.0
        %529 = vmatprep.subr.mxu0 0.0
        %530 = vmatpush1.msra.mxu0 0.0
        %531 = vmatprep.subr.mxu0 0.0
        %532 = vmatpush1.msra.mxu0 0.0
        %533 = vmatprep.subr.mxu0 0.0
        %534 = vmatpush1.msra.mxu0 0.0
        %535 = vmatprep.subr.mxu0 0.0
        %536 = vmatpush1.msra.mxu0 0.0
        %537 = vmatprep.subr.mxu0 0.0
        %538 = vmatpush1.msra.mxu0 0.0
        %539 = vmatprep.subr.mxu0 0.0
        %540 = vmatpush1.msra.mxu0 0.0
        %541 = vmatprep.mubr.f32.mxu0 0.0
        %542 = vmatmul.mubr.f32.gmra.mrb[0].mxu0 %v450
        %v543 = vpop.f32.mrb[0].mxu0
        %v544 = vadd.f32 0.0, %v543
        %v545 = vpop.f32.mrb[0].mxu0
        %546 = vmatprep.mubr.f32.mxu0 0.0
        %547 = vmatmul.mubr.f32.gmra.mrb[0].mxu0 %v453
        %v548 = vpop.f32.mrb[0].mxu0
        %v549 = vadd.f32 0.0, %v548
        %v550 = vpop.f32.mrb[0].mxu0
        %551 = vmatprep.mubr.f32.mxu0 0.0
        %552 = vmatmul.mubr.f32.gmra.mrb[0].mxu0 %v456
        %v553 = vpop.f32.mrb[0].mxu0
        %v554 = vadd.f32 0.0, %v553
        %v555 = vpop.f32.mrb[0].mxu0
        %556 = vmatprep.mubr.f32.mxu0 0.0
        %557 = vmatmul.mubr.f32.gmra.mrb[0].mxu0 %v459
        %v558 = vpop.f32.mrb[0].mxu0
        %v559 = vadd.f32 0.0, %v558
        %v560 = vpop.f32.mrb[0].mxu0
        %561 = vmatprep.mubr.f32.mxu0 0.0
        %562 = vmatmul.mubr.f32.gmra.mrb[0].mxu0 %v462
        %v563 = vpop.f32.mrb[0].mxu0
        %v564 = vadd.f32 0.0, %v563
        %v565 = vpop.f32.mrb[0].mxu0
        %566 = vmatprep.mubr.f32.mxu0 0.0
        %567 = vmatmul.mubr.f32.gmra.mrb[0].mxu0 %v465
        %v568 = vpop.f32.mrb[0].mxu0
        %v569 = vadd.f32 0.0, %v568
        %v570 = vpop.f32.mrb[0].mxu0
        %571 = vmatprep.mubr.f32.mxu0 0.0
        %572 = vmatmul.mubr.f32.gmra.mrb[0].mxu0 %v468
        %v573 = vpop.f32.mrb[0].mxu0
        %v574 = vadd.f32 0.0, %v573
        %v575 = vpop.f32.mrb[0].mxu0
        %576 = vmatprep.mubr.f32.mxu0 0.0
        %577 = vmatmul.mubr.f32.gmra.mrb[0].mxu0 %v471
        %v578 = vpop.f32.mrb[0].mxu0
        %v579 = vadd.f32 0.0, %v578
        %v580 = vpop.f32.mrb[0].mxu0
        %581 = vdwg.mxu0
        %v583 = vsel %vm448, %v327, 0
        %v586 = vsel %vm448, %v328, 0
        %v589 = vsel %vm448, %v329, 0
        %v592 = vsel %vm448, %v330, 0
        %v595 = vsel %vm448, %v331, 0
        %v598 = vsel %vm448, %v332, 0
        %v601 = vsel %vm448, %v333, 0
        %v604 = vsel %vm448, %v334, 0
        %v607 = vsel %vm473, %v336, 0
        %609 = vmatprep.subr.mxu0 0.0
        %610 = vmatpush1.msra.mxu0 %v335
        %611 = vmatprep.subr.mxu0 0.0
        %612 = vmatpush1.msra.mxu0 %v607
        %613 = vmatprep.subr.mxu0 0.0
        %614 = vmatpush1.msra.mxu0 0.0
        %615 = vmatprep.subr.mxu0 0.0
        %616 = vmatpush1.msra.mxu0 0.0
        %617 = vmatprep.subr.mxu0 0.0
        %618 = vmatpush1.msra.mxu0 0.0
        %619 = vmatprep.subr.mxu0 0.0
        %620 = vmatpush1.msra.mxu0 0.0
        %621 = vmatprep.subr.mxu0 0.0
        %622 = vmatpush1.msra.mxu0 0.0
        %623 = vmatprep.subr.mxu0 0.0
        %624 = vmatpush1.msra.mxu0 0.0
        %625 = vmatprep.subr.mxu0 0.0
        %626 = vmatpush1.msra.mxu0 0.0
        %627 = vmatprep.subr.mxu0 0.0
        %628 = vmatpush1.msra.mxu0 0.0
        %629 = vmatprep.subr.mxu0 0.0
        %630 = vmatpush1.msra.mxu0 0.0
        %631 = vmatprep.subr.mxu0 0.0
        %632 = vmatpush1.msra.mxu0 0.0
        %633 = vmatprep.subr.mxu0 0.0
        %634 = vmatpush1.msra.mxu0 0.0
        %635 = vmatprep.subr.mxu0 0.0
        %636 = vmatpush1.msra.mxu0 0.0
        %637 = vmatprep.subr.mxu0 0.0
        %638 = vmatpush1.msra.mxu0 0.0
        %639 = vmatprep.subr.mxu0 0.0
        %640 = vmatpush1.msra.mxu0 0.0
        %641 = vmatprep.subr.mxu0 0.0
        %642 = vmatpush1.msra.mxu0 0.0
        %643 = vmatprep.subr.mxu0 0.0
        %644 = vmatpush1.msra.mxu0 0.0
        %645 = vmatprep.subr.mxu0 0.0
        %646 = vmatpush1.msra.mxu0 0.0
        %647 = vmatprep.subr.mxu0 0.0
        %648 = vmatpush1.msra.mxu0 0.0
        %649 = vmatprep.subr.mxu0 0.0
        %650 = vmatpush1.msra.mxu0 0.0
        %651 = vmatprep.subr.mxu0 0.0
        %652 = vmatpush1.msra.mxu0 0.0
        %653 = vmatprep.subr.mxu0 0.0
        %654 = vmatpush1.msra.mxu0 0.0
        %655 = vmatprep.subr.mxu0 0.0
        %656 = vmatpush1.msra.mxu0 0.0
        %657 = vmatprep.subr.mxu0 0.0
        %658 = vmatpush1.msra.mxu0 0.0
        %659 = vmatprep.subr.mxu0 0.0
        %660 = vmatpush1.msra.mxu0 0.0
        %661 = vmatprep.subr.mxu0 0.0
        %662 = vmatpush1.msra.mxu0 0.0
        %663 = vmatprep.subr.mxu0 0.0
        %664 = vmatpush1.msra.mxu0 0.0
        %665 = vmatprep.subr.mxu0 0.0
        %666 = vmatpush1.msra.mxu0 0.0
        %667 = vmatprep.subr.mxu0 0.0
        %668 = vmatpush1.msra.mxu0 0.0
        %669 = vmatprep.subr.mxu0 0.0
        %670 = vmatpush1.msra.mxu0 0.0
        %671 = vmatprep.subr.mxu0 0.0
        %672 = vmatpush1.msra.mxu0 0.0
        %673 = vmatprep.mubr.f32.mxu0 0.0
        %674 = vmatmul.mubr.f32.gmra.mrb[0].mxu0 %v583
        %v675 = vpop.f32.mrb[0].mxu0
        %v676 = vadd.f32 %v544, %v675
        %v677 = vpop.f32.mrb[0].mxu0
        %678 = vmatprep.mubr.f32.mxu0 0.0
        %679 = vmatmul.mubr.f32.gmra.mrb[0].mxu0 %v586
        %v680 = vpop.f32.mrb[0].mxu0
        %v681 = vadd.f32 %v549, %v680
        %v682 = vpop.f32.mrb[0].mxu0
        %683 = vmatprep.mubr.f32.mxu0 0.0
        %684 = vmatmul.mubr.f32.gmra.mrb[0].mxu0 %v589
        %v685 = vpop.f32.mrb[0].mxu0
        %v686 = vadd.f32 %v554, %v685
        %v687 = vpop.f32.mrb[0].mxu0
        %688 = vmatprep.mubr.f32.mxu0 0.0
        %689 = vmatmul.mubr.f32.gmra.mrb[0].mxu0 %v592
        %v690 = vpop.f32.mrb[0].mxu0
        %v691 = vadd.f32 %v559, %v690
        %v692 = vpop.f32.mrb[0].mxu0
        %693 = vmatprep.mubr.f32.mxu0 0.0
        %694 = vmatmul.mubr.f32.gmra.mrb[0].mxu0 %v595
        %v695 = vpop.f32.mrb[0].mxu0
        %v696 = vadd.f32 %v564, %v695
        %v697 = vpop.f32.mrb[0].mxu0
        %698 = vmatprep.mubr.f32.mxu0 0.0
        %699 = vmatmul.mubr.f32.gmra.mrb[0].mxu0 %v598
        %v700 = vpop.f32.mrb[0].mxu0
        %v701 = vadd.f32 %v569, %v700
        %v702 = vpop.f32.mrb[0].mxu0
        %703 = vmatprep.mubr.f32.mxu0 0.0
        %704 = vmatmul.mubr.f32.gmra.mrb[0].mxu0 %v601
        %v705 = vpop.f32.mrb[0].mxu0
        %v706 = vadd.f32 %v574, %v705
        %v707 = vpop.f32.mrb[0].mxu0
        %708 = vmatprep.mubr.f32.mxu0 0.0
        %709 = vmatmul.mubr.f32.gmra.mrb[0].mxu0 %v604
        %v710 = vpop.f32.mrb[0].mxu0
        %v711 = vadd.f32 %v579, %v710
        %v712 = vpop.f32.mrb[0].mxu0
        %713 = vdwg.mxu0
        %s714 = sadd.s32 %s224, 1
        %s715 = smul.u32 %s714, 16
        %s716 = scalar_lea.vmem %s215, %s715
        %v717 = vld [vmem:[%s716] sm:$0xff]
        %v718 = vld [vmem:[%s716 + $0x10] sm:$0xff]
        %v719 = vld [vmem:[%s716 + $0x20] sm:$0xff]
        %v720 = vld [vmem:[%s716 + $0x30] sm:$0xff]
        %v721 = vld [vmem:[%s716 + $0x40] sm:$0xff]
        %v722 = vld [vmem:[%s716 + $0x50] sm:$0xff]
        %v723 = vld [vmem:[%s716 + $0x60] sm:$0xff]
        %v724 = vld [vmem:[%s716 + $0x70] sm:$0xff]
        %s725 = sadd.s32 %s715, 144
        %s726 = scalar_lea.vmem %s215, %s725
        %v727 = vld [vmem:[%s726] sm:$0xff]
        %v728 = vld [vmem:[%s726 + $0x10] sm:$0xff]
        %v729 = vld [vmem:[%s726 + $0x20] sm:$0xff]
        %v730 = vld [vmem:[%s726 + $0x30] sm:$0xff]
        %v731 = vld [vmem:[%s726 + $0x40] sm:$0xff]
        %v732 = vld [vmem:[%s726 + $0x50] sm:$0xff]
        %v733 = vld [vmem:[%s726 + $0x60] sm:$0xff]
        %v734 = vld [vmem:[%s726 + $0x70] sm:$0xff]
        %v735 = vld [vmem:[%s716 + $0x1] sm:$0xff]
        %v736 = vld [vmem:[%s716 + $0x11] sm:$0xff]
        %v737 = vld [vmem:[%s716 + $0x21] sm:$0xff]
        %v738 = vld [vmem:[%s716 + $0x31] sm:$0xff]
        %v739 = vld [vmem:[%s716 + $0x41] sm:$0xff]
        %v740 = vld [vmem:[%s716 + $0x51] sm:$0xff]
        %v741 = vld [vmem:[%s716 + $0x61] sm:$0xff]
        %v742 = vld [vmem:[%s716 + $0x71] sm:$0xff]
        %751 = vrot.lane.b32.xlu0 %v727, 4
        %v752 = vpop.permute.xlu0 %751
        %753 = vrot.lane.b32.xlu0 %v728, 4
        %v754 = vpop.permute.xlu0 %753
        %755 = vrot.lane.b32.xlu0 %v729, 4
        %v756 = vpop.permute.xlu0 %755
        %757 = vrot.lane.b32.xlu0 %v730, 4
        %v758 = vpop.permute.xlu0 %757
        %759 = vrot.lane.b32.xlu0 %v731, 4
        %v760 = vpop.permute.xlu0 %759
        %761 = vrot.lane.b32.xlu0 %v732, 4
        %v762 = vpop.permute.xlu0 %761
        %763 = vrot.lane.b32.xlu0 %v733, 4
        %v764 = vpop.permute.xlu0 %763
        %765 = vrot.lane.b32.xlu0 %v734, 4
        %v766 = vpop.permute.xlu0 %765
        %783 = vrot.lane.b32.xlu0 %v735, 8
        %v784 = vpop.permute.xlu0 %783
        %785 = vrot.lane.b32.xlu0 %v736, 8
        %v786 = vpop.permute.xlu0 %785
        %787 = vrot.lane.b32.xlu0 %v737, 8
        %v788 = vpop.permute.xlu0 %787
        %789 = vrot.lane.b32.xlu0 %v738, 8
        %v790 = vpop.permute.xlu0 %789
        %791 = vrot.lane.b32.xlu0 %v739, 8
        %v792 = vpop.permute.xlu0 %791
        %793 = vrot.lane.b32.xlu0 %v740, 8
        %v794 = vpop.permute.xlu0 %793
        %795 = vrot.lane.b32.xlu0 %v741, 8
        %v796 = vpop.permute.xlu0 %795
        %797 = vrot.lane.b32.xlu0 %v742, 8
        %v798 = vpop.permute.xlu0 %797
        %v807 = vsel %vm317, %v717, %v752
        %v808 = vsel %vm317, %v718, %v754
        %v809 = vsel %vm317, %v719, %v756
        %v810 = vsel %vm317, %v720, %v758
        %v811 = vsel %vm317, %v721, %v760
        %v812 = vsel %vm317, %v722, %v762
        %v813 = vsel %vm317, %v723, %v764
        %v814 = vsel %vm317, %v724, %v766
        %v815 = vsel %vm326, %v807, %v784
        %v816 = vsel %vm326, %v808, %v786
        %v817 = vsel %vm326, %v809, %v788
        %v818 = vsel %vm326, %v810, %v790
        %v819 = vsel %vm326, %v811, %v792
        %v820 = vsel %vm326, %v812, %v794
        %v821 = vsel %vm326, %v813, %v796
        %v822 = vsel %vm326, %v814, %v798
        %s823 = scalar_lea.vmem %s219, 32
        %v824 = vld [vmem:[%s823] sm:$0xff]
        %v825 = vld [vmem:[%s823 + $0x8] sm:$0xf]
        %v827 = vsel %vm448, %v815, 0
        %v830 = vsel %vm448, %v816, 0
        %v833 = vsel %vm448, %v817, 0
        %v836 = vsel %vm448, %v818, 0
        %v839 = vsel %vm448, %v819, 0
        %v842 = vsel %vm448, %v820, 0
        %v845 = vsel %vm448, %v821, 0
        %v848 = vsel %vm448, %v822, 0
        %v851 = vsel %vm473, %v825, 0
        %853 = vmatprep.subr.mxu0 0.0
        %854 = vmatpush1.msra.mxu0 %v824
        %855 = vmatprep.subr.mxu0 0.0
        %856 = vmatpush1.msra.mxu0 %v851
        %857 = vmatprep.subr.mxu0 0.0
        %858 = vmatpush1.msra.mxu0 0.0
        %859 = vmatprep.subr.mxu0 0.0
        %860 = vmatpush1.msra.mxu0 0.0
        %861 = vmatprep.subr.mxu0 0.0
        %862 = vmatpush1.msra.mxu0 0.0
        %863 = vmatprep.subr.mxu0 0.0
        %864 = vmatpush1.msra.mxu0 0.0
        %865 = vmatprep.subr.mxu0 0.0
        %866 = vmatpush1.msra.mxu0 0.0
        %867 = vmatprep.subr.mxu0 0.0
        %868 = vmatpush1.msra.mxu0 0.0
        %869 = vmatprep.subr.mxu0 0.0
        %870 = vmatpush1.msra.mxu0 0.0
        %871 = vmatprep.subr.mxu0 0.0
        %872 = vmatpush1.msra.mxu0 0.0
        %873 = vmatprep.subr.mxu0 0.0
        %874 = vmatpush1.msra.mxu0 0.0
        %875 = vmatprep.subr.mxu0 0.0
        %876 = vmatpush1.msra.mxu0 0.0
        %877 = vmatprep.subr.mxu0 0.0
        %878 = vmatpush1.msra.mxu0 0.0
        %879 = vmatprep.subr.mxu0 0.0
        %880 = vmatpush1.msra.mxu0 0.0
        %881 = vmatprep.subr.mxu0 0.0
        %882 = vmatpush1.msra.mxu0 0.0
        %883 = vmatprep.subr.mxu0 0.0
        %884 = vmatpush1.msra.mxu0 0.0
        %885 = vmatprep.subr.mxu0 0.0
        %886 = vmatpush1.msra.mxu0 0.0
        %887 = vmatprep.subr.mxu0 0.0
        %888 = vmatpush1.msra.mxu0 0.0
        %889 = vmatprep.subr.mxu0 0.0
        %890 = vmatpush1.msra.mxu0 0.0
        %891 = vmatprep.subr.mxu0 0.0
        %892 = vmatpush1.msra.mxu0 0.0
        %893 = vmatprep.subr.mxu0 0.0
        %894 = vmatpush1.msra.mxu0 0.0
        %895 = vmatprep.subr.mxu0 0.0
        %896 = vmatpush1.msra.mxu0 0.0
        %897 = vmatprep.subr.mxu0 0.0
        %898 = vmatpush1.msra.mxu0 0.0
        %899 = vmatprep.subr.mxu0 0.0
        %900 = vmatpush1.msra.mxu0 0.0
        %901 = vmatprep.subr.mxu0 0.0
        %902 = vmatpush1.msra.mxu0 0.0
        %903 = vmatprep.subr.mxu0 0.0
        %904 = vmatpush1.msra.mxu0 0.0
        %905 = vmatprep.subr.mxu0 0.0
        %906 = vmatpush1.msra.mxu0 0.0
        %907 = vmatprep.subr.mxu0 0.0
        %908 = vmatpush1.msra.mxu0 0.0
        %909 = vmatprep.subr.mxu0 0.0
        %910 = vmatpush1.msra.mxu0 0.0
        %911 = vmatprep.subr.mxu0 0.0
        %912 = vmatpush1.msra.mxu0 0.0
        %913 = vmatprep.subr.mxu0 0.0
        %914 = vmatpush1.msra.mxu0 0.0
        %915 = vmatprep.subr.mxu0 0.0
        %916 = vmatpush1.msra.mxu0 0.0
        %917 = vmatprep.mubr.f32.mxu0 0.0
        %918 = vmatmul.mubr.f32.gmra.mrb[0].mxu0 %v827
        %v919 = vpop.f32.mrb[0].mxu0
        %v920 = vadd.f32 0.0, %v919
        %v921 = vpop.f32.mrb[0].mxu0
        %922 = vmatprep.mubr.f32.mxu0 0.0
        %923 = vmatmul.mubr.f32.gmra.mrb[0].mxu0 %v830
        %v924 = vpop.f32.mrb[0].mxu0
        %v925 = vadd.f32 0.0, %v924
        %v926 = vpop.f32.mrb[0].mxu0
        %927 = vmatprep.mubr.f32.mxu0 0.0
        %928 = vmatmul.mubr.f32.gmra.mrb[0].mxu0 %v833
        %v929 = vpop.f32.mrb[0].mxu0
        %v930 = vadd.f32 0.0, %v929
        %v931 = vpop.f32.mrb[0].mxu0
        %932 = vmatprep.mubr.f32.mxu0 0.0
        %933 = vmatmul.mubr.f32.gmra.mrb[0].mxu0 %v836
        %v934 = vpop.f32.mrb[0].mxu0
        %v935 = vadd.f32 0.0, %v934
        %v936 = vpop.f32.mrb[0].mxu0
        %937 = vmatprep.mubr.f32.mxu0 0.0
        %938 = vmatmul.mubr.f32.gmra.mrb[0].mxu0 %v839
        %v939 = vpop.f32.mrb[0].mxu0
        %v940 = vadd.f32 0.0, %v939
        %v941 = vpop.f32.mrb[0].mxu0
        %942 = vmatprep.mubr.f32.mxu0 0.0
        %943 = vmatmul.mubr.f32.gmra.mrb[0].mxu0 %v842
        %v944 = vpop.f32.mrb[0].mxu0
        %v945 = vadd.f32 0.0, %v944
        %v946 = vpop.f32.mrb[0].mxu0
        %947 = vmatprep.mubr.f32.mxu0 0.0
        %948 = vmatmul.mubr.f32.gmra.mrb[0].mxu0 %v845
        %v949 = vpop.f32.mrb[0].mxu0
        %v950 = vadd.f32 0.0, %v949
        %v951 = vpop.f32.mrb[0].mxu0
        %952 = vmatprep.mubr.f32.mxu0 0.0
        %953 = vmatmul.mubr.f32.gmra.mrb[0].mxu0 %v848
        %v954 = vpop.f32.mrb[0].mxu0
        %v955 = vadd.f32 0.0, %v954
        %v956 = vpop.f32.mrb[0].mxu0
        %957 = vdwg.mxu0
        %v958 = vadd.f32 %v676, %v920
        %v959 = vadd.f32 %v681, %v925
        %v960 = vadd.f32 %v686, %v930
        %v961 = vadd.f32 %v691, %v935
        %v962 = vadd.f32 %v696, %v940
        %v963 = vadd.f32 %v701, %v945
        %v964 = vadd.f32 %v706, %v950
        %v965 = vadd.f32 %v711, %v955
        %v966 = vld [vmem:[%s222] sm:$0x1]
        %v968 = vlaneseq
        %v969 = vshrl.u32 %v968, 7
        %v970 = vsub.s32 0, %v969
        %v971 = vrot.slane %v966, %v970
        %v973 = vadd.f32 %v958, %v971
        %v974 = vadd.f32 %v959, %v971
        %v975 = vadd.f32 %v960, %v971
        %v976 = vadd.f32 %v961, %v971
        %v977 = vadd.f32 %v962, %v971
        %v978 = vadd.f32 %v963, %v971
        %v979 = vadd.f32 %v964, %v971
        %v980 = vadd.f32 %v965, %v971
        %v981 = vmax.f32 %v973, 0.0
        %v982 = vmax.f32 %v974, 0.0
        %v983 = vmax.f32 %v975, 0.0
        %v984 = vmax.f32 %v976, 0.0
        %v985 = vmax.f32 %v977, 0.0
        %v986 = vmax.f32 %v978, 0.0
        %v987 = vmax.f32 %v979, 0.0
        %v988 = vmax.f32 %v980, 0.0
        %989 = vst [vmem:[%s210] sm:$0xff] %v981
        %990 = vst [vmem:[%s210 + $0x8] sm:$0xff] %v982
        %991 = vst [vmem:[%s210 + $0x10] sm:$0xff] %v983
        %992 = vst [vmem:[%s210 + $0x18] sm:$0xff] %v984
        %993 = vst [vmem:[%s210 + $0x20] sm:$0xff] %v985
        %994 = vst [vmem:[%s210 + $0x28] sm:$0xff] %v986
        %995 = vst [vmem:[%s210 + $0x30] sm:$0xff] %v987
        %996 = vst [vmem:[%s210 + $0x38] sm:$0xff] %v988
        %s997 = sand.u32 %s126, 1
        %s998 = scalar_lea.sflag [#allocation3], %s997
        %s999 = sand.u32 %s126, 1
        %s1000 = smul.addr %s999, 64
        %s1001 = scalar_lea.vmem [#allocation2], %s1000
        // Predicated region
        $region33: #{tpu_custom_call.1} parent=31 // pred_check
          %p1002 = pneg %p136
        $region34: #{tpu_custom_call.1} parent=31 // pred_check_branch
          %1004 = sbr.rel (%p1002) target = $region36
        $region35: #{tpu_custom_call.1} parent=31 // pred_region
          %s1005 = smul.u32 8, %s24
          %s1007 = ssub.s32 1024, 1024
          %1008 = vsyncadd %s998, %s1007
          %s1009 = sadd.s32 %s23, %s1005
          %s1010 = smul.addr %s22, 8
          %s1011 = sadd.s32 %s1009, %s1010
          %s1012 = smul.addr %s1011, 128
          %s1013 = scalar_lea.hbm %s3, %s1012
          %s1014 = sshll.u32 %s1001, 4
          %s1015 = int_to_ptr.vmem [resolvable:$true] %s1014
          %1020 = dma.vmem_to_hbm [thread:$0]  %s1015, 1024, %s1013, %s998, 128, 128, 8
        $region36: #{tpu_custom_call.1} parent=31 // pred_fallthru
          _
      $region32: #{tpu_custom_call.1} parent=5 // pred_fallthru
        _
      %p1021 = scmp.le.s32.totalorder 2, %s12
      // Predicated region
      $region37: #{tpu_custom_call.1} parent=5 // pred_check
        %p1022 = pneg %p1021
      $region38: #{tpu_custom_call.1} parent=5 // pred_check_branch
        %1024 = sbr.rel (%p1022) target = $region40
      $region39: #{tpu_custom_call.1} parent=5 // pred_region
        %s1025 = ssub.s32 %s12, 2
        // Predicated region
        $region41: #{tpu_custom_call.1} parent=39 // pred_check
          %p1026 = pneg %p142
        $region42: #{tpu_custom_call.1} parent=39 // pred_check_branch
          %1028 = sbr.rel (%p1026) target = $region44
        $region43: #{tpu_custom_call.1} parent=39 // pred_region
          %s1029 = sand.u32 %s127, 1
          %s1030 = scalar_lea.sflag [#allocation3], %s1029
          %s1031 = sand.u32 %s127, 1
          %s1032 = smul.addr %s1031, 64
          %s1033 = scalar_lea.vmem [#allocation2], %s1032
          %1034 = dma.done %s1030, 1024
        $region44: #{tpu_custom_call.1} parent=39 // pred_fallthru
          _
      $region40: #{tpu_custom_call.1} parent=5 // pred_fallthru
        _
    $region6: #{tpu_custom_call.1} parent=1 // loop_footer
      %s16 = sadd.s32 1, %s12
    $region7: #{tpu_custom_call.1} parent=1 // loop_footer_branch
      %11 = sbr.rel target = $region3
    $region8: #{tpu_custom_call.1} parent=1 // loop_exit
      _
    %1035 = vsyncpa [#allocation3], 1
    %s1036 = scalar_lea.sflag [#allocation3], 1
    %1037 = vsyncpa %s1036, 1

</llo_original>
